<compile_context>
chip_gen: v7x
topology: tpu7x:2x2x1
jax: 0.10.0
libtpu: 0.0.40
codegen_flags: <defaults>
</compile_context>

<pallas_src>
import jax
import jax.numpy as jnp
from jax import lax
from jax.experimental import pallas as pl
from jax.experimental.pallas import tpu as pltpu


def _round_up(x, m):
    return (x + m - 1) // m * m


# ---------------------------------------------------------------------------
# Kernel 1: fused im2col-matmul convolution + per-block BN partial statistics
# ---------------------------------------------------------------------------
def _conv_stats_kernel(a_ref, w_ref, y_ref, s_ref, ss_ref):
    # a_ref : (TM, Kc)      bf16 im2col rows for this tile
    # w_ref : (Kc, Cp)      bf16 reshaped weights, Cp = round_up(Cout, 128)
    # y_ref : (TM, Cp)      f32 conv output tile (lane-dense last dim)
    # s_ref, ss_ref : (1, 1, Cp) per-block partial sum / sum of squares
    acc = jnp.dot(a_ref[...], w_ref[...], preferred_element_type=jnp.float32)
    y_ref[...] = acc
    s_ref[...] = jnp.sum(acc, axis=0, keepdims=True)[None]
    ss_ref[...] = jnp.sum(acc * acc, axis=0, keepdims=True)[None]


# ---------------------------------------------------------------------------
# Kernel 2: BatchNorm apply as a single scale/shift FMA (tiled)
# ---------------------------------------------------------------------------
def _bn_apply_kernel(y_ref, scale_ref, shift_ref, o_ref):
    # y_ref : (TM, Cp) f32 ; scale_ref/shift_ref : (1, Cp) f32
    o_ref[...] = y_ref[...] * scale_ref[...] + shift_ref[...]


# ---------------------------------------------------------------------------
# Wrapper
# ---------------------------------------------------------------------------
def basic_conv2d(x_nchw, w_oihw, gamma, beta, *, stride=1, padding=0,
                 dilation=1, eps=1e-5, block_m=256):
    N, Cin, H, W = x_nchw.shape
    Cout, Cin_w, KH, KW = w_oihw.shape
    assert Cin == Cin_w

    Ho = (H + 2 * padding - dilation * (KH - 1) - 1) // stride + 1
    Wo = (W + 2 * padding - dilation * (KW - 1) - 1) // stride + 1

    # ---- XLA glue: NCHW->NHWC, pad, im2col in bf16 --------------------------
    # TODO(synk): im2col in the wrapper costs a KH*KW x input blowup in HBM;
    # an in-kernel halo/im2col (manual DMA) would remove it at larger scales.
    x = jnp.transpose(x_nchw, (0, 2, 3, 1)).astype(jnp.bfloat16)     # NHWC
    x_pad = jnp.pad(x, ((0, 0), (padding, padding), (padding, padding), (0, 0)))

    patches = []
    for kh in range(KH):
        for kw in range(KW):
            h0 = kh * dilation
            w0 = kw * dilation
            patches.append(
                x_pad[:, h0:h0 + (Ho - 1) * stride + 1:stride,
                         w0:w0 + (Wo - 1) * stride + 1:stride, :])
    Kc = KH * KW * Cin
    M = N * Ho * Wo
    a = jnp.concatenate(patches, axis=-1).reshape(M, Kc)              # (M, Kc) bf16

    # weights: OIHW -> HWIO -> (Kc, Cout), pad Cout to lane width (128)
    Cp = _round_up(Cout, 128)
    w = jnp.transpose(w_oihw, (2, 3, 1, 0)).astype(jnp.bfloat16).reshape(Kc, Cout)
    w = jnp.pad(w, ((0, 0), (0, Cp - Cout)))                          # (Kc, Cp)

    # pad M so the row tiling divides evenly (zero rows -> zero conv output,
    # so they contribute nothing to the BN sums; count uses the true M).
    TM = min(block_m, _round_up(M, 8))
    Mp = _round_up(M, TM)
    a = jnp.pad(a, ((0, Mp - M), (0, 0)))
    n_blocks = Mp // TM

    flops = 2 * Mp * Kc * Cp
    bytes_accessed = (Mp * Kc * 2 + Kc * Cp * 2 + Mp * Cp * 4
                      + 2 * n_blocks * Cp * 4)

    conv_out, psum, psumsq = pl.pallas_call(
        _conv_stats_kernel,
        out_shape=(
            jax.ShapeDtypeStruct((Mp, Cp), jnp.float32),
            jax.ShapeDtypeStruct((n_blocks, 1, Cp), jnp.float32),
            jax.ShapeDtypeStruct((n_blocks, 1, Cp), jnp.float32),
        ),
        grid_spec=pltpu.PrefetchScalarGridSpec(
            num_scalar_prefetch=0,
            grid=(n_blocks,),
            in_specs=[
                pl.BlockSpec((TM, Kc), lambda i: (i, 0)),
                pl.BlockSpec((Kc, Cp), lambda i: (0, 0)),
            ],
            out_specs=[
                pl.BlockSpec((TM, Cp), lambda i: (i, 0)),
                pl.BlockSpec((1, 1, Cp), lambda i: (i, 0, 0)),
                pl.BlockSpec((1, 1, Cp), lambda i: (i, 0, 0)),
            ],
        ),
        compiler_params=pltpu.CompilerParams(
            dimension_semantics=("parallel",)),
        cost_estimate=pl.CostEstimate(
            flops=flops, transcendentals=0, bytes_accessed=bytes_accessed),
    )(a, w)

    # ---- tiny per-channel reduction + BN scale/shift (plain JAX glue) -------
    # Training-mode BatchNorm semantics (batch statistics, biased variance).
    # TODO(synk): eval-mode running_mean/running_var tracking is not modeled.
    cnt = jnp.float32(M)
    total = jnp.sum(psum, axis=(0, 1))            # (Cp,)
    total_sq = jnp.sum(psumsq, axis=(0, 1))       # (Cp,)
    mean = total / cnt
    var = total_sq / cnt - mean * mean            # one-pass biased variance
    g = jnp.pad(gamma.astype(jnp.float32), (0, Cp - Cout))
    b = jnp.pad(beta.astype(jnp.float32), (0, Cp - Cout))
    scale = (g * lax.rsqrt(var + eps)).reshape(1, Cp)
    shift = (b - mean * g * lax.rsqrt(var + eps)).reshape(1, Cp)

    # ---- tiled normalize (single FMA per element) ---------------------------
    y = pl.pallas_call(
        _bn_apply_kernel,
        out_shape=jax.ShapeDtypeStruct((Mp, Cp), jnp.float32),
        grid_spec=pltpu.PrefetchScalarGridSpec(
            num_scalar_prefetch=0,
            grid=(n_blocks,),
            in_specs=[
                pl.BlockSpec((TM, Cp), lambda i: (i, 0)),
                pl.BlockSpec((1, Cp), lambda i: (0, 0)),
                pl.BlockSpec((1, Cp), lambda i: (0, 0)),
            ],
            out_specs=pl.BlockSpec((TM, Cp), lambda i: (i, 0)),
        ),
        compiler_params=pltpu.CompilerParams(
            dimension_semantics=("parallel",)),
    )(conv_out, scale, shift)

    # drop padding, back to PyTorch NCHW
    y = y[:M, :Cout].reshape(N, Ho, Wo, Cout)
    return jnp.transpose(y, (0, 3, 1, 2))


# ---------------------------------------------------------------------------
# Pure-JAX reference (bf16-rounded inputs to match the MXU data path)
# ---------------------------------------------------------------------------
def _reference(x_nchw, w_oihw, gamma, beta, *, stride, padding, dilation, eps):
    x = x_nchw.astype(jnp.bfloat16).astype(jnp.float32)
    w = w_oihw.astype(jnp.bfloat16).astype(jnp.float32)
    conv = lax.conv_general_dilated(
        x, w,
        window_strides=(stride, stride),
        padding=((padding, padding), (padding, padding)),
        rhs_dilation=(dilation, dilation),
        dimension_numbers=("NCHW", "OIHW", "NCHW"))
    mean = jnp.mean(conv, axis=(0, 2, 3), keepdims=True)
    var = jnp.mean((conv - mean) ** 2, axis=(0, 2, 3), keepdims=True)
    g = gamma.reshape(1, -1, 1, 1)
    b = beta.reshape(1, -1, 1, 1)
    return (conv - mean) * lax.rsqrt(var + eps) * g + b


if __name__ == "__main__":
    # BasicConv2d(in_planes=4, out_planes=8, kernel_size=3, stride=1,
    #             padding=1, dilation=1)
    N, Cin, H, W = 2, 4, 16, 16
    Cout, K = 8, 3
    stride, padding, dilation, eps = 1, 1, 1, 1e-5

    key = jax.random.PRNGKey(0)
    kx, kw, kg, kb = jax.random.split(key, 4)
    x = jax.random.normal(kx, (N, Cin, H, W), dtype=jnp.float32)
    w = jax.random.normal(kw, (Cout, Cin, K, K), dtype=jnp.float32) * 0.1
    gamma = 1.0 + 0.1 * jax.random.normal(kg, (Cout,), dtype=jnp.float32)
    beta = 0.1 * jax.random.normal(kb, (Cout,), dtype=jnp.float32)

    out = basic_conv2d(x, w, gamma, beta, stride=stride, padding=padding,
                       dilation=dilation, eps=eps)
    out = jax.block_until_ready(out)

    ref = _reference(x, w, gamma, beta, stride=stride, padding=padding,
                     dilation=dilation, eps=eps)
    assert out.shape == (N, Cout, H, W), out.shape
    assert jnp.allclose(out, ref, atol=2e-3, rtol=2e-3), \
        float(jnp.max(jnp.abs(out - ref)))

    print("KERNEL_OK")
</pallas_src>

<mosaic_0001>
module attributes {stable_mosaic.version = 11 : i64} {
  func.func @_conv_stats_kernel(%arg0: i32, %arg1: memref<256x36xbf16, #tpu.memory_space<vmem>>, %arg2: memref<36x128xbf16, #tpu.memory_space<vmem>>, %arg3: memref<256x128xf32, #tpu.memory_space<vmem>>, %arg4: memref<1x1x128xf32, #tpu.memory_space<vmem>>, %arg5: memref<1x1x128xf32, #tpu.memory_space<vmem>>) attributes {dimension_semantics = [#tpu.dimension_semantics<parallel>], iteration_bounds = array<i64: 2>, scalar_prefetch = 0 : i64, scratch_operands = 0 : i64, tpu.core_type = #tpu.core_type<tc>, window_params = [{transform_indices = @transform_0, window_bounds = array<i64: 256, 36>}, {pipeline_mode = #tpu.pipeline_mode<synchronous>, transform_indices = @transform_1, window_bounds = array<i64: 36, 128>}, {transform_indices = @transform_2, window_bounds = array<i64: 256, 128>}, {transform_indices = @transform_3, window_bounds = array<i64: 1, 1, 128>}, {transform_indices = @transform_4, window_bounds = array<i64: 1, 1, 128>}]} {
    %c0 = arith.constant 0 : index
    %c0_0 = arith.constant 0 : index
    %0 = vector.load %arg1[%c0, %c0_0] : memref<256x36xbf16, #tpu.memory_space<vmem>>, vector<256x36xbf16>
    %c0_1 = arith.constant 0 : index
    %c0_2 = arith.constant 0 : index
    %1 = vector.load %arg2[%c0_1, %c0_2] : memref<36x128xbf16, #tpu.memory_space<vmem>>, vector<36x128xbf16>
    %cst = arith.constant dense<0.000000e+00> : vector<256x128xf32>
    %2 = tpu.matmul %0, %1, %cst {dimension_numbers = #tpu.dot_dimension_numbers<[1], [0], [0], [1], [0, 0, 1, 1], [], []>} : vector<256x36xbf16>, vector<36x128xbf16>, vector<256x128xf32> -> vector<256x128xf32>
    %c0_3 = arith.constant 0 : index
    %c0_4 = arith.constant 0 : index
    %3 = vector.load %arg3[%c0_3, %c0_4] : memref<256x128xf32, #tpu.memory_space<vmem>>, vector<256x128xf32>
    tpu.vector_store %arg3[%c0_3, %c0_4], %2 {strides = array<i32>} : memref<256x128xf32, #tpu.memory_space<vmem>>, vector<256x128xf32>,
    %cst_5 = arith.constant dense<0.000000e+00> : vector<128xf32>
    %4 = vector.multi_reduction <add>, %2, %cst_5 [0] : vector<256x128xf32> to vector<128xf32>
    %5 = vector.shape_cast %4 : vector<128xf32> to vector<1x128xf32>
    %6 = vector.shape_cast %5 : vector<1x128xf32> to vector<1x1x128xf32>
    %c0_6 = arith.constant 0 : index
    %c0_7 = arith.constant 0 : index
    %c0_8 = arith.constant 0 : index
    %7 = vector.load %arg4[%c0_6, %c0_7, %c0_8] : memref<1x1x128xf32, #tpu.memory_space<vmem>>, vector<1x1x128xf32>
    tpu.vector_store %arg4[%c0_6, %c0_7, %c0_8], %6 {strides = array<i32>} : memref<1x1x128xf32, #tpu.memory_space<vmem>>, vector<1x1x128xf32>,
    %8 = arith.mulf %2, %2 : vector<256x128xf32>
    %cst_9 = arith.constant dense<0.000000e+00> : vector<128xf32>
    %9 = vector.multi_reduction <add>, %8, %cst_9 [0] : vector<256x128xf32> to vector<128xf32>
    %10 = vector.shape_cast %9 : vector<128xf32> to vector<1x128xf32>
    %11 = vector.shape_cast %10 : vector<1x128xf32> to vector<1x1x128xf32>
    %c0_10 = arith.constant 0 : index
    %c0_11 = arith.constant 0 : index
    %c0_12 = arith.constant 0 : index
    %12 = vector.load %arg5[%c0_10, %c0_11, %c0_12] : memref<1x1x128xf32, #tpu.memory_space<vmem>>, vector<1x1x128xf32>
    tpu.vector_store %arg5[%c0_10, %c0_11, %c0_12], %11 {strides = array<i32>} : memref<1x1x128xf32, #tpu.memory_space<vmem>>, vector<1x1x128xf32>,
    return
  }
  func.func @transform_0(%arg0: i32) -> (i32, i32) {
    %c0_i32 = arith.constant 0 : i32
    %c0_i32_0 = arith.constant 0 : i32
    return %arg0, %c0_i32 : i32, i32
  }
  func.func @transform_1(%arg0: i32) -> (i32, i32) {
    %c0_i32 = arith.constant 0 : i32
    %c0_i32_0 = arith.constant 0 : i32
    %c0_i32_1 = arith.constant 0 : i32
    return %c0_i32, %c0_i32_0 : i32, i32
  }
  func.func @transform_2(%arg0: i32) -> (i32, i32) {
    %c0_i32 = arith.constant 0 : i32
    %c0_i32_0 = arith.constant 0 : i32
    return %arg0, %c0_i32 : i32, i32
  }
  func.func @transform_3(%arg0: i32) -> (i32, i32, i32) {
    %c0_i32 = arith.constant 0 : i32
    %c0_i32_0 = arith.constant 0 : i32
    %c0_i32_1 = arith.constant 0 : i32
    return %arg0, %c0_i32, %c0_i32_0 : i32, i32, i32
  }
  func.func @transform_4(%arg0: i32) -> (i32, i32, i32) {
    %c0_i32 = arith.constant 0 : i32
    %c0_i32_0 = arith.constant 0 : i32
    %c0_i32_1 = arith.constant 0 : i32
    return %arg0, %c0_i32, %c0_i32_0 : i32, i32, i32
  }
}

</mosaic_0001>

<llo_original>
// kernel: tpu_custom_call.1
$region0: #{tpu_custom_call.1}
  #allocation0 [shape = 'u32[]', space=smem, size = 0x4, offset = 0x4, fixed_abs, tag = 'smem constant byte address 0x4 - core index']
  #allocation1 [shape = 'u32[144,128]{1,0:T(1,128)}', space=vmem, size = 0x12000, scoped, tag = 'internal scratch']
  %s0 = inlined_call_operand.vmem [shape: bf16[512,36], index: 0, kind: input, shape index: {}]
  %s1 = inlined_call_operand.vmem [shape: bf16[36,128], index: 1, kind: input, shape index: {}]
  %s2 = inlined_call_operand.hbm [shape: f32[512,128], index: 2, kind: output, shape index: {0}]
  %s3 = inlined_call_operand.hbm [shape: f32[2,1,128], index: 3, kind: output, shape index: {1}]
  %s4 = inlined_call_operand.hbm [shape: f32[2,1,128], index: 4, kind: output, shape index: {2}]
  %5 = xla_tuple %s2, %s3, %s4
  %s6 = sld [smem:[#allocation0]]
  $region57: #{tpu_custom_call.1} parent=0
    _
  %s8 = ssub.s32 1, %s6
  %s9 = scalar_select 0, %s8, %s6
  $region1: #{tpu_custom_call.1} parent=0
    #allocation2 [shape = 'u8[262144]{0}', space=vmem, size = 0x40000, scoped, tag = 'output window, operand 0']
    #allocation3 [shape = 's32[2]{0}', space=sflag, size = 0x8, scoped, tag = 'scoped memory for tpu_custom_call.1']
    #allocation4 [shape = 'u8[1024]{0}', space=vmem, size = 0x400, scoped, tag = 'output window, operand 1']
    #allocation5 [shape = 's32[2]{0}', space=sflag, size = 0x8, scoped, tag = 'scoped memory for tpu_custom_call.1']
    #allocation6 [shape = 'u8[1024]{0}', space=vmem, size = 0x400, scoped, tag = 'output window, operand 2']
    %10 = vsyncpa [#allocation3], 0
    %s11 = scalar_lea.sflag [#allocation3], 1
    %12 = vsyncpa %s11, 0
    %13 = vsyncpa [#allocation5], 0
    %s14 = scalar_lea.sflag [#allocation5], 1
    %15 = vsyncpa %s14, 0
    loop: start=0, step=1, limit=4
    $region2: #{tpu_custom_call.1} parent=1 // loop_pre_header
      _
    $region3: #{tpu_custom_call.1} parent=1 // loop_header
      %s17 = sphi 0, %s21
      %p18 = scmp.ge.s32.totalorder %s17, 4
      %s27 = sphi 0, %s29
      %s30 = sphi 0, %s27
      %s31 = sphi 0, %s30
      %s47 = sphi 0, %s31
      %s51 = sphi 0, %s51
      %s53 = sphi 0, %s51
      %s54 = sphi 0, %s53
      %s68 = sphi 0, %s54
      %s74 = sphi 0, %s76
      %s77 = sphi 0, %s74
      %s78 = sphi 0, %s77
      %s94 = sphi 0, %s78
      %s100 = sphi 0, %s102
      %s103 = sphi 0, %s100
      %s104 = sphi 0, %s103
      %s120 = sphi 0, %s104
      %s126 = sphi 0, %s128
      %s129 = sphi 0, %s126
      %s130 = sphi 0, %s129
      %s146 = sphi 0, %s130
    $region4: #{tpu_custom_call.1} parent=1 // loop_header_branch
      %20 = sbr.rel (%p18) target = $region8
    $region5: #{tpu_custom_call.1} parent=1 // loop_body
      %s22 = ssub.s32 %s17, 1
      %s23 = ssub.s32 %s17, 2
      %s24 = sadd.s32 %s17, 1
      %s25 = ssub.s32 %s17, %s24
      %p26 = scmp.eq.s32.totalorder %s25, 0
      %s28 = sadd.s32 %s27, 1
      %s29 = scalar_select %p26, %s27, %s28
      %p32 = pneg %p26
      %p33 = scmp.eq.s32.totalorder %s17, 1
      %p34 = por %p32, %p33
      %p35 = scmp.ne.s32.totalorder %s27, %s30
      %p36 = scmp.eq.s32.totalorder %s17, 0
      %p37 = por %p35, %p36
      %p38 = scmp.ne.s32.totalorder %s27, %s30
      %p39 = scmp.eq.s32.totalorder %s22, 1
      %p40 = por %p38, %p39
      %p41 = scmp.ne.s32.totalorder %s30, %s31
      %p42 = scmp.eq.s32.totalorder %s22, 0
      %p43 = por %p41, %p42
      %p44 = scmp.ne.s32.totalorder %s30, %s31
      %p45 = scmp.eq.s32.totalorder %s23, 1
      %p46 = por %p44, %p45
      %p48 = scmp.ne.s32.totalorder %s31, %s47
      %p49 = scmp.eq.s32.totalorder %s23, 0
      %p50 = por %p48, %p49
      %s52 = sadd.s32 %s51, 1
      %p55 = scmp.eq.s32.totalorder %s17, 1
      %p56 = scmp.ne.s32.totalorder %s51, %s53
      %p57 = scmp.eq.s32.totalorder %s17, 0
      %p58 = por %p56, %p57
      %p59 = scmp.ne.s32.totalorder %s51, %s53
      %p60 = scmp.eq.s32.totalorder %s22, 1
      %p61 = por %p59, %p60
      %p62 = scmp.ne.s32.totalorder %s53, %s54
      %p63 = scmp.eq.s32.totalorder %s22, 0
      %p64 = por %p62, %p63
      %p65 = scmp.ne.s32.totalorder %s53, %s54
      %p66 = scmp.eq.s32.totalorder %s23, 1
      %p67 = por %p65, %p66
      %p69 = scmp.ne.s32.totalorder %s54, %s68
      %p70 = scmp.eq.s32.totalorder %s23, 0
      %p71 = por %p69, %p70
      %s72 = ssub.s32 %s17, %s24
      %p73 = scmp.eq.s32.totalorder %s72, 0
      %s75 = sadd.s32 %s74, 1
      %s76 = scalar_select %p73, %s74, %s75
      %p79 = pneg %p73
      %p80 = scmp.eq.s32.totalorder %s17, 1
      %p81 = por %p79, %p80
      %p82 = scmp.ne.s32.totalorder %s74, %s77
      %p83 = scmp.eq.s32.totalorder %s17, 0
      %p84 = por %p82, %p83
      %p85 = scmp.ne.s32.totalorder %s74, %s77
      %p86 = scmp.eq.s32.totalorder %s22, 1
      %p87 = por %p85, %p86
      %p88 = scmp.ne.s32.totalorder %s77, %s78
      %p89 = scmp.eq.s32.totalorder %s22, 0
      %p90 = por %p88, %p89
      %p91 = scmp.ne.s32.totalorder %s77, %s78
      %p92 = scmp.eq.s32.totalorder %s23, 1
      %p93 = por %p91, %p92
      %p95 = scmp.ne.s32.totalorder %s78, %s94
      %p96 = scmp.eq.s32.totalorder %s23, 0
      %p97 = por %p95, %p96
      %s98 = ssub.s32 %s17, %s24
      %p99 = scmp.eq.s32.totalorder %s98, 0
      %s101 = sadd.s32 %s100, 1
      %s102 = scalar_select %p99, %s100, %s101
      %p105 = pneg %p99
      %p106 = scmp.eq.s32.totalorder %s17, 1
      %p107 = por %p105, %p106
      %p108 = scmp.ne.s32.totalorder %s100, %s103
      %p109 = scmp.eq.s32.totalorder %s17, 0
      %p110 = por %p108, %p109
      %p111 = scmp.ne.s32.totalorder %s100, %s103
      %p112 = scmp.eq.s32.totalorder %s22, 1
      %p113 = por %p111, %p112
      %p114 = scmp.ne.s32.totalorder %s103, %s104
      %p115 = scmp.eq.s32.totalorder %s22, 0
      %p116 = por %p114, %p115
      %p117 = scmp.ne.s32.totalorder %s103, %s104
      %p118 = scmp.eq.s32.totalorder %s23, 1
      %p119 = por %p117, %p118
      %p121 = scmp.ne.s32.totalorder %s104, %s120
      %p122 = scmp.eq.s32.totalorder %s23, 0
      %p123 = por %p121, %p122
      %s124 = ssub.s32 %s17, %s24
      %p125 = scmp.eq.s32.totalorder %s124, 0
      %s127 = sadd.s32 %s126, 1
      %s128 = scalar_select %p125, %s126, %s127
      %p131 = pneg %p125
      %p132 = scmp.eq.s32.totalorder %s17, 1
      %p133 = por %p131, %p132
      %p134 = scmp.ne.s32.totalorder %s126, %s129
      %p135 = scmp.eq.s32.totalorder %s17, 0
      %p136 = por %p134, %p135
      %p137 = scmp.ne.s32.totalorder %s126, %s129
      %p138 = scmp.eq.s32.totalorder %s22, 1
      %p139 = por %p137, %p138
      %p140 = scmp.ne.s32.totalorder %s129, %s130
      %p141 = scmp.eq.s32.totalorder %s22, 0
      %p142 = por %p140, %p141
      %p143 = scmp.ne.s32.totalorder %s129, %s130
      %p144 = scmp.eq.s32.totalorder %s23, 1
      %p145 = por %p143, %p144
      %p147 = scmp.ne.s32.totalorder %s130, %s146
      %p148 = scmp.eq.s32.totalorder %s23, 0
      %p149 = por %p147, %p148
      %p150 = scmp.le.s32.totalorder 1, %s17
      %p151 = scmp.lt.s32.totalorder %s17, 3
      %p152 = pnand %p150, %p151
      %p153 = pneg %p152
      // Predicated region
      $region9: #{tpu_custom_call.1} parent=5 // pred_check
        _
      $region10: #{tpu_custom_call.1} parent=5 // pred_check_branch
        %155 = sbr.rel (%p152) target = $region12
      $region11: #{tpu_custom_call.1} parent=5 // pred_region
        %s156 = ssub.s32 %s17, 1
        // Predicated region
        $region13: #{tpu_custom_call.1} parent=11 // pred_check
          %p157 = pneg %p64
        $region14: #{tpu_custom_call.1} parent=11 // pred_check_branch
          %159 = sbr.rel (%p157) target = $region16
        $region15: #{tpu_custom_call.1} parent=11 // pred_region
          _
        $region16: #{tpu_custom_call.1} parent=11 // pred_fallthru
          _
      $region12: #{tpu_custom_call.1} parent=5 // pred_fallthru
        _
      %p160 = scmp.lt.s32.totalorder %s17, 2
      // Predicated region
      $region17: #{tpu_custom_call.1} parent=5 // pred_check
        %p161 = pneg %p160
      $region18: #{tpu_custom_call.1} parent=5 // pred_check_branch
        %163 = sbr.rel (%p161) target = $region20
      $region19: #{tpu_custom_call.1} parent=5 // pred_region
        // Predicated region
        $region21: #{tpu_custom_call.1} parent=19 // pred_check
          %p164 = pneg %p37
        $region22: #{tpu_custom_call.1} parent=19 // pred_check_branch
          %166 = sbr.rel (%p164) target = $region24
        $region23: #{tpu_custom_call.1} parent=19 // pred_region
          %s167 = smul.u32 32, %s17
          %p168 = scmp.lt.s32.totalorder %s167, 63
          %s169 = scalar_select %p168, %s167, 63
          %s170 = smul.addr %s169, 4
          %s171 = scalar_lea.vmem %s0, %s170
          %s172 = smul.u32 32, %s17
        $region24: #{tpu_custom_call.1} parent=19 // pred_fallthru
          _
      $region20: #{tpu_custom_call.1} parent=5 // pred_fallthru
        _
      %p173 = scmp.le.s32.totalorder 1, %s17
      %p174 = scmp.lt.s32.totalorder %s17, 3
      %p175 = pnand %p173, %p174
      %p176 = pneg %p175
      // Predicated region
      $region25: #{tpu_custom_call.1} parent=5 // pred_check
        _
      $region26: #{tpu_custom_call.1} parent=5 // pred_check_branch
        %178 = sbr.rel (%p175) target = $region28
      $region27: #{tpu_custom_call.1} parent=5 // pred_region
        %s179 = ssub.s32 %s17, 1
        %s180 = smul.u32 32, %s22
        %p181 = scmp.lt.s32.totalorder %s180, 63
        %s182 = scalar_select %p181, %s180, 63
        %s183 = smul.addr %s182, 4
        %s184 = scalar_lea.vmem %s0, %s183
        %p185 = pneg %p43
        %p186 = pneg %p40
        %p187 = pneg %p64
        %p188 = pneg %p61
        %p189 = pneg %p90
        %p190 = pneg %p87
        %s191 = sand.u32 %s77, 1
        %s192 = scalar_lea.sflag [#allocation3], %s191
        %s193 = sand.u32 %s77, 1
        %s194 = smul.addr %s193, 256
        %s195 = scalar_lea.vmem [#allocation2], %s194
        %p196 = pneg %p116
        %p197 = pneg %p113
        %s198 = sand.u32 %s22, 1
        %s199 = scalar_lea.sflag [#allocation5], %s198
        %s200 = sand.u32 %s103, 1
        %s201 = scalar_lea.vmem [#allocation4], %s200
        %p202 = pneg %p142
        %p203 = pneg %p139
        %s204 = sand.u32 %s22, 1
        %s205 = scalar_lea.sflag [#allocation5], %s204
        %s206 = sand.u32 %s129, 1
        %s207 = scalar_lea.vmem [#allocation6], %s206
        %s208 = smul.u32 32, %s22
        %p209 = scmp.lt.s32.totalorder %s208, 63
        %s210 = scalar_select %p209, %s208, 63
        %s211 = smul.addr %s210, 4
        %s212 = scalar_lea.vmem %s0, %s211
        %s213 = smul.u32 32, %s22
        %s214 = smul.u32 32, %s22
        %v216 = vld [vmem:[%s212] sm:$0xf]
        %v217 = vld [vmem:[%s212 + $0x4] sm:$0xf]
        %v218 = vld [vmem:[%s212 + $0x8] sm:$0xf]
        %v219 = vld [vmem:[%s212 + $0xc] sm:$0xf]
        %v220 = vld [vmem:[%s212 + $0x10] sm:$0xf]
        %v221 = vld [vmem:[%s212 + $0x14] sm:$0xf]
        %v222 = vld [vmem:[%s212 + $0x18] sm:$0xf]
        %v223 = vld [vmem:[%s212 + $0x1c] sm:$0xf]
        %v224 = vld [vmem:[%s212 + $0x20] sm:$0xf]
        %v225 = vld [vmem:[%s212 + $0x24] sm:$0xf]
        %v226 = vld [vmem:[%s212 + $0x28] sm:$0xf]
        %v227 = vld [vmem:[%s212 + $0x2c] sm:$0xf]
        %v228 = vld [vmem:[%s212 + $0x30] sm:$0xf]
        %v229 = vld [vmem:[%s212 + $0x34] sm:$0xf]
        %v230 = vld [vmem:[%s212 + $0x38] sm:$0xf]
        %v231 = vld [vmem:[%s212 + $0x3c] sm:$0xf]
        %v232 = vld [vmem:[%s212 + $0x40] sm:$0xf]
        %v233 = vld [vmem:[%s212 + $0x44] sm:$0xf]
        %v234 = vld [vmem:[%s212 + $0x48] sm:$0xf]
        %v235 = vld [vmem:[%s212 + $0x4c] sm:$0xf]
        %v236 = vld [vmem:[%s212 + $0x50] sm:$0xf]
        %v237 = vld [vmem:[%s212 + $0x54] sm:$0xf]
        %v238 = vld [vmem:[%s212 + $0x58] sm:$0xf]
        %v239 = vld [vmem:[%s212 + $0x5c] sm:$0xf]
        %v240 = vld [vmem:[%s212 + $0x60] sm:$0xf]
        %v241 = vld [vmem:[%s212 + $0x64] sm:$0xf]
        %v242 = vld [vmem:[%s212 + $0x68] sm:$0xf]
        %v243 = vld [vmem:[%s212 + $0x6c] sm:$0xf]
        %v244 = vld [vmem:[%s212 + $0x70] sm:$0xf]
        %v245 = vld [vmem:[%s212 + $0x74] sm:$0xf]
        %v246 = vld [vmem:[%s212 + $0x78] sm:$0xf]
        %v247 = vld [vmem:[%s212 + $0x7c] sm:$0xf]
        %v248 = vld [vmem:[%s1] sm:$0xf]
        %v249 = vld [vmem:[%s1 + $0x4] sm:$0xf]
        %v250 = vld [vmem:[%s1 + $0x8] sm:$0xf]
        %v251 = vld [vmem:[%s1 + $0xc] sm:$0xf]
        %v252 = vld [vmem:[%s1 + $0x10] sm:$0x3]
        %v285 = vunpack.c.l.b16 %v216
        %v286 = vunpack.c.l.b16 %v217
        %v287 = vunpack.c.l.b16 %v218
        %v288 = vunpack.c.l.b16 %v219
        %v289 = vunpack.c.l.b16 %v220
        %v290 = vunpack.c.l.b16 %v221
        %v291 = vunpack.c.l.b16 %v222
        %v292 = vunpack.c.l.b16 %v223
        %v293 = vunpack.c.l.b16 %v224
        %v294 = vunpack.c.l.b16 %v225
        %v295 = vunpack.c.l.b16 %v226
        %v296 = vunpack.c.l.b16 %v227
        %v297 = vunpack.c.l.b16 %v228
        %v298 = vunpack.c.l.b16 %v229
        %v299 = vunpack.c.l.b16 %v230
        %v300 = vunpack.c.l.b16 %v231
        %v301 = vunpack.c.l.b16 %v232
        %v302 = vunpack.c.l.b16 %v233
        %v303 = vunpack.c.l.b16 %v234
        %v304 = vunpack.c.l.b16 %v235
        %v305 = vunpack.c.l.b16 %v236
        %v306 = vunpack.c.l.b16 %v237
        %v307 = vunpack.c.l.b16 %v238
        %v308 = vunpack.c.l.b16 %v239
        %v309 = vunpack.c.l.b16 %v240
        %v310 = vunpack.c.l.b16 %v241
        %v311 = vunpack.c.l.b16 %v242
        %v312 = vunpack.c.l.b16 %v243
        %v313 = vunpack.c.l.b16 %v244
        %v314 = vunpack.c.l.b16 %v245
        %v315 = vunpack.c.l.b16 %v246
        %v316 = vunpack.c.l.b16 %v247
        %v317 = vpack.c.b16 %v286, %v285
        %v318 = vpack.c.b16 %v288, %v287
        %v319 = vpack.c.b16 %v290, %v289
        %v320 = vpack.c.b16 %v292, %v291
        %v321 = vpack.c.b16 %v294, %v293
        %v322 = vpack.c.b16 %v296, %v295
        %v323 = vpack.c.b16 %v298, %v297
        %v324 = vpack.c.b16 %v300, %v299
        %v325 = vpack.c.b16 %v302, %v301
        %v326 = vpack.c.b16 %v304, %v303
        %v327 = vpack.c.b16 %v306, %v305
        %v328 = vpack.c.b16 %v308, %v307
        %v329 = vpack.c.b16 %v310, %v309
        %v330 = vpack.c.b16 %v312, %v311
        %v331 = vpack.c.b16 %v314, %v313
        %v332 = vpack.c.b16 %v316, %v315
        %v338 = vunpack.c.l.b16 %v248
        %v339 = vunpack.c.l.b16 %v249
        %v340 = vunpack.c.l.b16 %v250
        %v341 = vunpack.c.l.b16 %v251
        %v342 = vunpack.c.l.b16 %v252
        %v343 = vpack.c.b16 %v339, %v338
        %v344 = vpack.c.b16 %v341, %v340
        %v345 = vpack.c.b16 %v342, %v342
        %vm348 = vcmask 293888
        %v350 = vsel %vm348, %v317, 0
        %v353 = vsel %vm348, %v318, 0
        %v356 = vsel %vm348, %v319, 0
        %v359 = vsel %vm348, %v320, 0
        %v362 = vsel %vm348, %v321, 0
        %v365 = vsel %vm348, %v322, 0
        %v368 = vsel %vm348, %v323, 0
        %v371 = vsel %vm348, %v324, 0
        %v374 = vsel %vm348, %v325, 0
        %v377 = vsel %vm348, %v326, 0
        %v380 = vsel %vm348, %v327, 0
        %v383 = vsel %vm348, %v328, 0
        %v386 = vsel %vm348, %v329, 0
        %v389 = vsel %vm348, %v330, 0
        %v392 = vsel %vm348, %v331, 0
        %v395 = vsel %vm348, %v332, 0
        %vm397 = vcmask 1041408
        %v399 = vsel %vm397, %v345, 0
        %401 = vmatprep.subr.bf16.mxu0 0
        %402 = vmatpush1.bf16.msra.mxu0 %v343
        %403 = vmatprep.subr.bf16.mxu0 0
        %404 = vmatpush1.bf16.msra.mxu0 %v344
        %405 = vmatprep.subr.bf16.mxu0 0
        %406 = vmatpush1.bf16.msra.mxu0 %v399
        %407 = vmatprep.subr.bf16.mxu0 0
        %408 = vmatpush1.bf16.msra.mxu0 0
        %409 = vmatprep.subr.bf16.mxu0 0
        %410 = vmatpush1.bf16.msra.mxu0 0
        %411 = vmatprep.subr.bf16.mxu0 0
        %412 = vmatpush1.bf16.msra.mxu0 0
        %413 = vmatprep.subr.bf16.mxu0 0
        %414 = vmatpush1.bf16.msra.mxu0 0
        %415 = vmatprep.subr.bf16.mxu0 0
        %416 = vmatpush1.bf16.msra.mxu0 0
        %417 = vmatprep.subr.bf16.mxu0 0
        %418 = vmatpush1.bf16.msra.mxu0 0
        %419 = vmatprep.subr.bf16.mxu0 0
        %420 = vmatpush1.bf16.msra.mxu0 0
        %421 = vmatprep.subr.bf16.mxu0 0
        %422 = vmatpush1.bf16.msra.mxu0 0
        %423 = vmatprep.subr.bf16.mxu0 0
        %424 = vmatpush1.bf16.msra.mxu0 0
        %425 = vmatprep.subr.bf16.mxu0 0
        %426 = vmatpush1.bf16.msra.mxu0 0
        %427 = vmatprep.subr.bf16.mxu0 0
        %428 = vmatpush1.bf16.msra.mxu0 0
        %429 = vmatprep.subr.bf16.mxu0 0
        %430 = vmatpush1.bf16.msra.mxu0 0
        %431 = vmatprep.subr.bf16.mxu0 0
        %432 = vmatpush1.bf16.msra.mxu0 0
        %433 = vmatprep.mubr.bf16.mxu0 0
        %434 = vmatmul.mubr.bf16.gmra.mrb[0].mxu0 %v350
        %v435 = vpop.f32.mrb[0].mxu0
        %v436 = vadd.f32 0.0, %v435
        %v437 = vpop.f32.mrb[0].mxu0
        %v438 = vpop.f32.mrb[0].mxu0
        %v439 = vadd.f32 0.0, %v438
        %v440 = vpop.f32.mrb[0].mxu0
        %441 = vmatprep.mubr.bf16.mxu0 0
        %442 = vmatmul.mubr.bf16.gmra.mrb[0].mxu0 %v353
        %v443 = vpop.f32.mrb[0].mxu0
        %v444 = vadd.f32 0.0, %v443
        %v445 = vpop.f32.mrb[0].mxu0
        %v446 = vpop.f32.mrb[0].mxu0
        %v447 = vadd.f32 0.0, %v446
        %v448 = vpop.f32.mrb[0].mxu0
        %449 = vmatprep.mubr.bf16.mxu0 0
        %450 = vmatmul.mubr.bf16.gmra.mrb[0].mxu0 %v356
        %v451 = vpop.f32.mrb[0].mxu0
        %v452 = vadd.f32 0.0, %v451
        %v453 = vpop.f32.mrb[0].mxu0
        %v454 = vpop.f32.mrb[0].mxu0
        %v455 = vadd.f32 0.0, %v454
        %v456 = vpop.f32.mrb[0].mxu0
        %457 = vmatprep.mubr.bf16.mxu0 0
        %458 = vmatmul.mubr.bf16.gmra.mrb[0].mxu0 %v359
        %v459 = vpop.f32.mrb[0].mxu0
        %v460 = vadd.f32 0.0, %v459
        %v461 = vpop.f32.mrb[0].mxu0
        %v462 = vpop.f32.mrb[0].mxu0
        %v463 = vadd.f32 0.0, %v462
        %v464 = vpop.f32.mrb[0].mxu0
        %465 = vmatprep.mubr.bf16.mxu0 0
        %466 = vmatmul.mubr.bf16.gmra.mrb[0].mxu0 %v362
        %v467 = vpop.f32.mrb[0].mxu0
        %v468 = vadd.f32 0.0, %v467
        %v469 = vpop.f32.mrb[0].mxu0
        %v470 = vpop.f32.mrb[0].mxu0
        %v471 = vadd.f32 0.0, %v470
        %v472 = vpop.f32.mrb[0].mxu0
        %473 = vmatprep.mubr.bf16.mxu0 0
        %474 = vmatmul.mubr.bf16.gmra.mrb[0].mxu0 %v365
        %v475 = vpop.f32.mrb[0].mxu0
        %v476 = vadd.f32 0.0, %v475
        %v477 = vpop.f32.mrb[0].mxu0
        %v478 = vpop.f32.mrb[0].mxu0
        %v479 = vadd.f32 0.0, %v478
        %v480 = vpop.f32.mrb[0].mxu0
        %481 = vmatprep.mubr.bf16.mxu0 0
        %482 = vmatmul.mubr.bf16.gmra.mrb[0].mxu0 %v368
        %v483 = vpop.f32.mrb[0].mxu0
        %v484 = vadd.f32 0.0, %v483
        %v485 = vpop.f32.mrb[0].mxu0
        %v486 = vpop.f32.mrb[0].mxu0
        %v487 = vadd.f32 0.0, %v486
        %v488 = vpop.f32.mrb[0].mxu0
        %489 = vmatprep.mubr.bf16.mxu0 0
        %490 = vmatmul.mubr.bf16.gmra.mrb[0].mxu0 %v371
        %v491 = vpop.f32.mrb[0].mxu0
        %v492 = vadd.f32 0.0, %v491
        %v493 = vpop.f32.mrb[0].mxu0
        %v494 = vpop.f32.mrb[0].mxu0
        %v495 = vadd.f32 0.0, %v494
        %v496 = vpop.f32.mrb[0].mxu0
        %497 = vmatprep.mubr.bf16.mxu0 0
        %498 = vmatmul.mubr.bf16.gmra.mrb[0].mxu0 %v374
        %v499 = vpop.f32.mrb[0].mxu0
        %v500 = vadd.f32 0.0, %v499
        %v501 = vpop.f32.mrb[0].mxu0
        %v502 = vpop.f32.mrb[0].mxu0
        %v503 = vadd.f32 0.0, %v502
        %v504 = vpop.f32.mrb[0].mxu0
        %505 = vmatprep.mubr.bf16.mxu0 0
        %506 = vmatmul.mubr.bf16.gmra.mrb[0].mxu0 %v377
        %v507 = vpop.f32.mrb[0].mxu0
        %v508 = vadd.f32 0.0, %v507
        %v509 = vpop.f32.mrb[0].mxu0
        %v510 = vpop.f32.mrb[0].mxu0
        %v511 = vadd.f32 0.0, %v510
        %v512 = vpop.f32.mrb[0].mxu0
        %513 = vmatprep.mubr.bf16.mxu0 0
        %514 = vmatmul.mubr.bf16.gmra.mrb[0].mxu0 %v380
        %v515 = vpop.f32.mrb[0].mxu0
        %v516 = vadd.f32 0.0, %v515
        %v517 = vpop.f32.mrb[0].mxu0
        %v518 = vpop.f32.mrb[0].mxu0
        %v519 = vadd.f32 0.0, %v518
        %v520 = vpop.f32.mrb[0].mxu0
        %521 = vmatprep.mubr.bf16.mxu0 0
        %522 = vmatmul.mubr.bf16.gmra.mrb[0].mxu0 %v383
        %v523 = vpop.f32.mrb[0].mxu0
        %v524 = vadd.f32 0.0, %v523
        %v525 = vpop.f32.mrb[0].mxu0
        %v526 = vpop.f32.mrb[0].mxu0
        %v527 = vadd.f32 0.0, %v526
        %v528 = vpop.f32.mrb[0].mxu0
        %529 = vmatprep.mubr.bf16.mxu0 0
        %530 = vmatmul.mubr.bf16.gmra.mrb[0].mxu0 %v386
        %v531 = vpop.f32.mrb[0].mxu0
        %v532 = vadd.f32 0.0, %v531
        %v533 = vpop.f32.mrb[0].mxu0
        %v534 = vpop.f32.mrb[0].mxu0
        %v535 = vadd.f32 0.0, %v534
        %v536 = vpop.f32.mrb[0].mxu0
        %537 = vmatprep.mubr.bf16.mxu0 0
        %538 = vmatmul.mubr.bf16.gmra.mrb[0].mxu0 %v389
        %v539 = vpop.f32.mrb[0].mxu0
        %v540 = vadd.f32 0.0, %v539
        %v541 = vpop.f32.mrb[0].mxu0
        %v542 = vpop.f32.mrb[0].mxu0
        %v543 = vadd.f32 0.0, %v542
        %v544 = vpop.f32.mrb[0].mxu0
        %545 = vmatprep.mubr.bf16.mxu0 0
        %546 = vmatmul.mubr.bf16.gmra.mrb[0].mxu0 %v392
        %v547 = vpop.f32.mrb[0].mxu0
        %v548 = vadd.f32 0.0, %v547
        %v549 = vpop.f32.mrb[0].mxu0
        %v550 = vpop.f32.mrb[0].mxu0
        %v551 = vadd.f32 0.0, %v550
        %v552 = vpop.f32.mrb[0].mxu0
        %553 = vmatprep.mubr.bf16.mxu0 0
        %554 = vmatmul.mubr.bf16.gmra.mrb[0].mxu0 %v395
        %v555 = vpop.f32.mrb[0].mxu0
        %v556 = vadd.f32 0.0, %v555
        %v557 = vpop.f32.mrb[0].mxu0
        %v558 = vpop.f32.mrb[0].mxu0
        %v559 = vadd.f32 0.0, %v558
        %v560 = vpop.f32.mrb[0].mxu0
        %561 = vdwg.mxu0
        %562 = vst [vmem:[%s195] sm:$0xff] %v436
        %563 = vst [vmem:[%s195 + $0x8] sm:$0xff] %v439
        %564 = vst [vmem:[%s195 + $0x10] sm:$0xff] %v444
        %565 = vst [vmem:[%s195 + $0x18] sm:$0xff] %v447
        %566 = vst [vmem:[%s195 + $0x20] sm:$0xff] %v452
        %567 = vst [vmem:[%s195 + $0x28] sm:$0xff] %v455
        %568 = vst [vmem:[%s195 + $0x30] sm:$0xff] %v460
        %569 = vst [vmem:[%s195 + $0x38] sm:$0xff] %v463
        %570 = vst [vmem:[%s195 + $0x40] sm:$0xff] %v468
        %571 = vst [vmem:[%s195 + $0x48] sm:$0xff] %v471
        %572 = vst [vmem:[%s195 + $0x50] sm:$0xff] %v476
        %573 = vst [vmem:[%s195 + $0x58] sm:$0xff] %v479
        %574 = vst [vmem:[%s195 + $0x60] sm:$0xff] %v484
        %575 = vst [vmem:[%s195 + $0x68] sm:$0xff] %v487
        %576 = vst [vmem:[%s195 + $0x70] sm:$0xff] %v492
        %577 = vst [vmem:[%s195 + $0x78] sm:$0xff] %v495
        %578 = vst [vmem:[%s195 + $0x80] sm:$0xff] %v500
        %579 = vst [vmem:[%s195 + $0x88] sm:$0xff] %v503
        %580 = vst [vmem:[%s195 + $0x90] sm:$0xff] %v508
        %581 = vst [vmem:[%s195 + $0x98] sm:$0xff] %v511
        %582 = vst [vmem:[%s195 + $0xa0] sm:$0xff] %v516
        %583 = vst [vmem:[%s195 + $0xa8] sm:$0xff] %v519
        %584 = vst [vmem:[%s195 + $0xb0] sm:$0xff] %v524
        %585 = vst [vmem:[%s195 + $0xb8] sm:$0xff] %v527
        %586 = vst [vmem:[%s195 + $0xc0] sm:$0xff] %v532
        %587 = vst [vmem:[%s195 + $0xc8] sm:$0xff] %v535
        %588 = vst [vmem:[%s195 + $0xd0] sm:$0xff] %v540
        %589 = vst [vmem:[%s195 + $0xd8] sm:$0xff] %v543
        %590 = vst [vmem:[%s195 + $0xe0] sm:$0xff] %v548
        %591 = vst [vmem:[%s195 + $0xe8] sm:$0xff] %v551
        %592 = vst [vmem:[%s195 + $0xf0] sm:$0xff] %v556
        %593 = vst [vmem:[%s195 + $0xf8] sm:$0xff] %v559
        %v594 = vadd.f32 %v436, %v439
        %v595 = vadd.f32 %v594, %v444
        %v596 = vadd.f32 %v595, %v447
        %v597 = vadd.f32 %v596, %v452
        %v598 = vadd.f32 %v597, %v455
        %v599 = vadd.f32 %v598, %v460
        %v600 = vadd.f32 %v599, %v463
        %v601 = vadd.f32 %v600, %v468
        %v602 = vadd.f32 %v601, %v471
        %v603 = vadd.f32 %v602, %v476
        %v604 = vadd.f32 %v603, %v479
        %v605 = vadd.f32 %v604, %v484
        %v606 = vadd.f32 %v605, %v487
        %v607 = vadd.f32 %v606, %v492
        %v608 = vadd.f32 %v607, %v495
        %v609 = vadd.f32 %v608, %v500
        %v610 = vadd.f32 %v609, %v503
        %v611 = vadd.f32 %v610, %v508
        %v612 = vadd.f32 %v611, %v511
        %v613 = vadd.f32 %v612, %v516
        %v614 = vadd.f32 %v613, %v519
        %v615 = vadd.f32 %v614, %v524
        %v616 = vadd.f32 %v615, %v527
        %v617 = vadd.f32 %v616, %v532
        %v618 = vadd.f32 %v617, %v535
        %v619 = vadd.f32 %v618, %v540
        %v620 = vadd.f32 %v619, %v543
        %v621 = vadd.f32 %v620, %v548
        %v622 = vadd.f32 %v621, %v551
        %v623 = vadd.f32 %v622, %v556
        %v624 = vadd.f32 %v623, %v559
        %v625 = vrot.slane %v624, 4
        %v626 = vadd.f32 %v624, %v625
        %v627 = vrot.slane %v626, 2
        %v628 = vadd.f32 %v626, %v627
        %v629 = vrot.slane %v628, 1
        %v630 = vadd.f32 %v628, %v629
        %631 = vst [vmem:[%s201] sm:$0x1] %v630
        %v632 = vmul.f32 %v436, %v436
        %v633 = vmul.f32 %v439, %v439
        %v634 = vmul.f32 %v444, %v444
        %v635 = vmul.f32 %v447, %v447
        %v636 = vmul.f32 %v452, %v452
        %v637 = vmul.f32 %v455, %v455
        %v638 = vmul.f32 %v460, %v460
        %v639 = vmul.f32 %v463, %v463
        %v640 = vmul.f32 %v468, %v468
        %v641 = vmul.f32 %v471, %v471
        %v642 = vmul.f32 %v476, %v476
        %v643 = vmul.f32 %v479, %v479
        %v644 = vmul.f32 %v484, %v484
        %v645 = vmul.f32 %v487, %v487
        %v646 = vmul.f32 %v492, %v492
        %v647 = vmul.f32 %v495, %v495
        %v648 = vmul.f32 %v500, %v500
        %v649 = vmul.f32 %v503, %v503
        %v650 = vmul.f32 %v508, %v508
        %v651 = vmul.f32 %v511, %v511
        %v652 = vmul.f32 %v516, %v516
        %v653 = vmul.f32 %v519, %v519
        %v654 = vmul.f32 %v524, %v524
        %v655 = vmul.f32 %v527, %v527
        %v656 = vmul.f32 %v532, %v532
        %v657 = vmul.f32 %v535, %v535
        %v658 = vmul.f32 %v540, %v540
        %v659 = vmul.f32 %v543, %v543
        %v660 = vmul.f32 %v548, %v548
        %v661 = vmul.f32 %v551, %v551
        %v662 = vmul.f32 %v556, %v556
        %v663 = vmul.f32 %v559, %v559
        %v664 = vadd.f32 %v632, %v633
        %v665 = vadd.f32 %v664, %v634
        %v666 = vadd.f32 %v665, %v635
        %v667 = vadd.f32 %v666, %v636
        %v668 = vadd.f32 %v667, %v637
        %v669 = vadd.f32 %v668, %v638
        %v670 = vadd.f32 %v669, %v639
        %v671 = vadd.f32 %v670, %v640
        %v672 = vadd.f32 %v671, %v641
        %v673 = vadd.f32 %v672, %v642
        %v674 = vadd.f32 %v673, %v643
        %v675 = vadd.f32 %v674, %v644
        %v676 = vadd.f32 %v675, %v645
        %v677 = vadd.f32 %v676, %v646
        %v678 = vadd.f32 %v677, %v647
        %v679 = vadd.f32 %v678, %v648
        %v680 = vadd.f32 %v679, %v649
        %v681 = vadd.f32 %v680, %v650
        %v682 = vadd.f32 %v681, %v651
        %v683 = vadd.f32 %v682, %v652
        %v684 = vadd.f32 %v683, %v653
        %v685 = vadd.f32 %v684, %v654
        %v686 = vadd.f32 %v685, %v655
        %v687 = vadd.f32 %v686, %v656
        %v688 = vadd.f32 %v687, %v657
        %v689 = vadd.f32 %v688, %v658
        %v690 = vadd.f32 %v689, %v659
        %v691 = vadd.f32 %v690, %v660
        %v692 = vadd.f32 %v691, %v661
        %v693 = vadd.f32 %v692, %v662
        %v694 = vadd.f32 %v693, %v663
        %v695 = vrot.slane %v694, 4
        %v696 = vadd.f32 %v694, %v695
        %v697 = vrot.slane %v696, 2
        %v698 = vadd.f32 %v696, %v697
        %v699 = vrot.slane %v698, 1
        %v700 = vadd.f32 %v698, %v699
        %701 = vst [vmem:[%s207] sm:$0x1] %v700
        %s702 = sand.u32 %s77, 1
        %s703 = scalar_lea.sflag [#allocation3], %s702
        %s704 = sand.u32 %s77, 1
        %s705 = smul.addr %s704, 256
        %s706 = scalar_lea.vmem [#allocation2], %s705
        %s707 = sand.u32 %s22, 1
        %s708 = scalar_lea.sflag [#allocation5], %s707
        %s709 = sand.u32 %s103, 1
        %s710 = scalar_lea.vmem [#allocation4], %s709
        %s711 = sand.u32 %s22, 1
        %s712 = scalar_lea.sflag [#allocation5], %s711
        %s713 = sand.u32 %s129, 1
        %s714 = scalar_lea.vmem [#allocation6], %s713
        // Predicated region
        $region29: #{tpu_custom_call.1} parent=27 // pred_check
          %p715 = pneg %p87
        $region30: #{tpu_custom_call.1} parent=27 // pred_check_branch
          %717 = sbr.rel (%p715) target = $region32
        $region31: #{tpu_custom_call.1} parent=27 // pred_region
          %s718 = smul.u32 32, %s22
          %s720 = ssub.s32 4096, 4096
          %721 = vsyncadd %s703, %s720
          %s722 = smul.addr %s718, 128
          %s723 = scalar_lea.hbm %s2, %s722
          %s724 = sshll.u32 %s706, 4
          %s725 = int_to_ptr.vmem [resolvable:$true] %s724
          %730 = dma.vmem_to_hbm [thread:$0]  %s725, 4096, %s723, %s703, 128, 128, 8
        $region32: #{tpu_custom_call.1} parent=27 // pred_fallthru
          _
        // Predicated region
        $region33: #{tpu_custom_call.1} parent=27 // pred_check
          %p731 = pneg %p113
        $region34: #{tpu_custom_call.1} parent=27 // pred_check_branch
          %733 = sbr.rel (%p731) target = $region36
        $region35: #{tpu_custom_call.1} parent=27 // pred_region
          %s735 = ssub.s32 16, 16
          %736 = vsyncadd %s708, %s735
          %s737 = smul.addr %s22, 16
          %s738 = scalar_lea.hbm %s3, %s737
          %s740 = sshll.u32 %s710, 4
          %s741 = int_to_ptr.vmem [resolvable:$true] %s740
          %743 = dma.vmem_to_hbm [thread:$0]  %s741, 16, %s738, %s708
        $region36: #{tpu_custom_call.1} parent=27 // pred_fallthru
          _
        // Predicated region
        $region37: #{tpu_custom_call.1} parent=27 // pred_check
          %p744 = pneg %p139
        $region38: #{tpu_custom_call.1} parent=27 // pred_check_branch
          %746 = sbr.rel (%p744) target = $region40
        $region39: #{tpu_custom_call.1} parent=27 // pred_region
          %s748 = ssub.s32 16, 16
          %749 = vsyncadd %s712, %s748
          %s750 = smul.addr %s22, 16
          %s751 = scalar_lea.hbm %s4, %s750
          %s753 = sshll.u32 %s714, 4
          %s754 = int_to_ptr.vmem [resolvable:$true] %s753
          %756 = dma.vmem_to_hbm [thread:$0]  %s754, 16, %s751, %s712
        $region40: #{tpu_custom_call.1} parent=27 // pred_fallthru
          _
      $region28: #{tpu_custom_call.1} parent=5 // pred_fallthru
        _
      %p757 = scmp.le.s32.totalorder 2, %s17
      // Predicated region
      $region41: #{tpu_custom_call.1} parent=5 // pred_check
        %p758 = pneg %p757
      $region42: #{tpu_custom_call.1} parent=5 // pred_check_branch
        %760 = sbr.rel (%p758) target = $region44
      $region43: #{tpu_custom_call.1} parent=5 // pred_region
        %s761 = ssub.s32 %s17, 2
        // Predicated region
        $region45: #{tpu_custom_call.1} parent=43 // pred_check
          %p762 = pneg %p93
        $region46: #{tpu_custom_call.1} parent=43 // pred_check_branch
          %764 = sbr.rel (%p762) target = $region48
        $region47: #{tpu_custom_call.1} parent=43 // pred_region
          %s765 = sand.u32 %s78, 1
          %s766 = scalar_lea.sflag [#allocation3], %s765
          %s767 = sand.u32 %s78, 1
          %s768 = smul.addr %s767, 256
          %s769 = scalar_lea.vmem [#allocation2], %s768
          %770 = dma.done %s766, 4096
        $region48: #{tpu_custom_call.1} parent=43 // pred_fallthru
          _
        // Predicated region
        $region49: #{tpu_custom_call.1} parent=43 // pred_check
          %p771 = pneg %p119
        $region50: #{tpu_custom_call.1} parent=43 // pred_check_branch
          %773 = sbr.rel (%p771) target = $region52
        $region51: #{tpu_custom_call.1} parent=43 // pred_region
          %s774 = sand.u32 %s23, 1
          %s775 = scalar_lea.sflag [#allocation5], %s774
          %s776 = sand.u32 %s104, 1
          %s777 = scalar_lea.vmem [#allocation4], %s776
          %778 = dma.done %s775, 16
        $region52: #{tpu_custom_call.1} parent=43 // pred_fallthru
          _
        // Predicated region
        $region53: #{tpu_custom_call.1} parent=43 // pred_check
          %p779 = pneg %p145
        $region54: #{tpu_custom_call.1} parent=43 // pred_check_branch
          %781 = sbr.rel (%p779) target = $region56
        $region55: #{tpu_custom_call.1} parent=43 // pred_region
          %s782 = sand.u32 %s23, 1
          %s783 = scalar_lea.sflag [#allocation5], %s782
          %s784 = sand.u32 %s130, 1
          %s785 = scalar_lea.vmem [#allocation6], %s784
          %786 = dma.done %s783, 16
        $region56: #{tpu_custom_call.1} parent=43 // pred_fallthru
          _
      $region44: #{tpu_custom_call.1} parent=5 // pred_fallthru
        _
    $region6: #{tpu_custom_call.1} parent=1 // loop_footer
      %s21 = sadd.s32 1, %s17
    $region7: #{tpu_custom_call.1} parent=1 // loop_footer_branch
      %16 = sbr.rel target = $region3
    $region8: #{tpu_custom_call.1} parent=1 // loop_exit
      _
    %787 = vsyncpa [#allocation3], 1
    %s788 = scalar_lea.sflag [#allocation3], 1
    %789 = vsyncpa %s788, 1
    %790 = vsyncpa [#allocation5], 1
    %s791 = scalar_lea.sflag [#allocation5], 1
    %792 = vsyncpa %s791, 1

</llo_original>
